<compile_context>
chip_gen: v6e
topology: v6e:2x2x1
jax: 0.10.0
libtpu: 0.0.40
codegen_flags: <defaults>
</compile_context>

<pallas_src>
import jax
import jax.numpy as jnp
from jax.experimental import pallas as pl
from jax.experimental.pallas import tpu as pltpu


def soft_q_kernel(state_ref, action_ref, w1s_ref, w1a_ref, w2_ref,
                  bias_ref, b3_ref, o_ref):
    n_critics = w2_ref.shape[0]
    state = state_ref[...]
    action = action_ref[...]

    qs = []
    for c in range(n_critics):           # static unroll over critics (C is 1 or 2)
        biases = bias_ref[c]              # (3, H) f32: [b1; b2; w3_row]
        b1 = biases[0:1, :]
        b2 = biases[1:2, :]
        w3 = biases[2:3, :]

        # linear1 over the (state | action) split: the concat is fused into two
        # matmuls (accepted: MXU is not the binding slot at these shapes).
        h1 = (jnp.dot(state, w1s_ref[c], preferred_element_type=jnp.float32)
              + jnp.dot(action, w1a_ref[c], preferred_element_type=jnp.float32)
              + b1)
        h1 = jnp.maximum(h1, 0.0)

        # linear2 + ReLU : (TB, H) @ (H, H) + (1, H); activation cast matches the
        # streaming dtype so bf16 mode stays on the MXU-native path.
        h2 = jnp.dot(h1.astype(w2_ref.dtype), w2_ref[c],
                     preferred_element_type=jnp.float32) + b2
        h2 = jnp.maximum(h2, 0.0)

        # linear3 (H -> 1): VPU multiply + cross-lane reduce (skips N=1 MXU matmul).
        q = jnp.sum(h2 * w3, axis=-1, keepdims=True) + b3_ref[c]
        qs.append(q)

    out = qs[0] if n_critics == 1 else jnp.concatenate(qs, axis=-1)
    o_ref[...] = out.astype(o_ref.dtype)


def _round_up(x, m):
    return ((x + m - 1) // m) * m


def _pick_tile(batch, block_b):
    """Batch tile: big enough to amortize per-step overhead, >=2 steps for v7x."""
    block_b = max(8, _round_up(block_b, 8))
    if batch <= 256:
        return batch                      # single step; tb == full dim is legal
    half = _round_up((batch + 1) // 2, 8)  # ensure grid >= 2 so both v7x TCs work
    return min(block_b, half)


def stack_params(params_list):
    """Stack per-critic params along a leading critic axis for the fused kernel."""
    w1s = jnp.stack([p[0] for p in params_list])                       # (C, I, H)
    w1a = jnp.stack([p[1] for p in params_list])                       # (C, A, H)
    w2 = jnp.stack([p[3] for p in params_list])                        # (C, H, H)
    bias_pack = jnp.stack(                                             # (C, 3, H)
        [jnp.concatenate([p[2], p[4], p[5]], axis=0) for p in params_list])
    b3 = jnp.concatenate([p[6] for p in params_list])                  # (C,)
    return w1s, w1a, w2, bias_pack, b3


def soft_q_forward(state, action, params_list, *, block_b=2048,
                   compute_dtype=jnp.float32):
    """Fused forward for C critics: q[:, c] = L3(relu(L2(relu(L1(cat(s, a))))))."""
    w1s, w1a, w2, bias_pack, b3 = stack_params(params_list)

    if jnp.dtype(compute_dtype) != jnp.dtype(jnp.float32):
        # Stream activations + big weights in bf16; f32 accumulation in the dots.
        state = state.astype(compute_dtype)
        action = action.astype(compute_dtype)
        w1s = w1s.astype(compute_dtype)
        w1a = w1a.astype(compute_dtype)
        w2 = w2.astype(compute_dtype)

    batch, num_inputs = state.shape
    num_actions = action.shape[1]
    n_critics = w2.shape[0]

    tb = _pick_tile(batch, block_b)
    grid = (pl.cdiv(batch, tb),)

    def batch_spec(cols):
        return pl.BlockSpec((tb, cols), lambda i: (i, 0))

    def resident_spec(shape):
        # Full-array block, constant index_map -> weights stay VMEM-resident.
        nd = len(shape)
        return pl.BlockSpec(shape, lambda i, _nd=nd: (0,) * _nd)

    return pl.pallas_call(
        soft_q_kernel,
        out_shape=jax.ShapeDtypeStruct((batch, n_critics), jnp.float32),
        grid=grid,
        in_specs=[
            batch_spec(num_inputs),                              # state  (tb, I)
            batch_spec(num_actions),                             # action (tb, A)
            resident_spec(w1s.shape),                            # (C, I, H)
            resident_spec(w1a.shape),                            # (C, A, H)
            resident_spec(w2.shape),                             # (C, H, H)
            resident_spec(bias_pack.shape),                      # (C, 3, H)
            pl.BlockSpec(memory_space=pltpu.MemorySpace.SMEM),   # b3 (C,)
        ],
        out_specs=pl.BlockSpec((tb, n_critics), lambda i: (i, 0)),
        compiler_params=pltpu.CompilerParams(
            dimension_semantics=("parallel",),   # batch sharded across v7x's 2 TCs
        ),
    )(state, action, w1s, w1a, w2, bias_pack, b3)


def init_params(key, num_inputs, num_actions, hidden_size):
    """Deterministic init mimicking nn.Linear's U(-1/sqrt(fan_in), 1/sqrt(fan_in))."""
    d_in = num_inputs + num_actions

    def uniform(k, shape, fan_in):
        bound = 1.0 / jnp.sqrt(jnp.float32(fan_in))
        return jax.random.uniform(k, shape, jnp.float32, -bound, bound)

    k1w, k1b, k2w, k2b, k3w, k3b = jax.random.split(key, 6)
    w1 = uniform(k1w, (d_in, hidden_size), d_in)
    w1s, w1a = w1[:num_inputs], w1[num_inputs:]           # split so concat is fused
    b1 = uniform(k1b, (1, hidden_size), d_in)
    w2 = uniform(k2w, (hidden_size, hidden_size), hidden_size)
    b2 = uniform(k2b, (1, hidden_size), hidden_size)
    w3_row = uniform(k3w, (1, hidden_size), hidden_size)  # linear3 weight as a row
    b3 = uniform(k3b, (1,), hidden_size)
    return (w1s, w1a, b1, w2, b2, w3_row, b3)


def _reference(state, action, params_list, compute_dtype=jnp.float32):
    """Pure-JAX reference with the same dtype discipline as the kernel."""
    cd = jnp.dtype(compute_dtype)
    s = state.astype(cd)
    a = action.astype(cd)
    qs = []
    for (w1s, w1a, b1, w2, b2, w3_row, b3) in params_list:
        h1 = (jnp.dot(s, w1s.astype(cd), preferred_element_type=jnp.float32)
              + jnp.dot(a, w1a.astype(cd), preferred_element_type=jnp.float32) + b1)
        h1 = jnp.maximum(h1, 0.0)
        h2 = jnp.dot(h1.astype(cd), w2.astype(cd),
                     preferred_element_type=jnp.float32) + b2
        h2 = jnp.maximum(h2, 0.0)
        qs.append(jnp.sum(h2 * w3_row, axis=-1, keepdims=True) + b3)
    return jnp.concatenate(qs, axis=-1)


if __name__ == "__main__":
    num_inputs, num_actions, hidden_size = 24, 8, 32
    batch = 8

    key = jax.random.PRNGKey(0)
    k_state, k_action, k_p1, k_p2 = jax.random.split(key, 4)

    state = jax.random.normal(k_state, (batch, num_inputs), jnp.float32)
    action = jax.random.normal(k_action, (batch, num_actions), jnp.float32)
    params_q1 = init_params(k_p1, num_inputs, num_actions, hidden_size)
    params_q2 = init_params(k_p2, num_inputs, num_actions, hidden_size)

    # 1) Single critic (exactly the original module), small batch, single grid step.
    q = soft_q_forward(state, action, [params_q1])
    jax.block_until_ready(q)
    ref = _reference(state, action, [params_q1])
    assert q.shape == (batch, 1)
    assert jnp.allclose(q, ref, atol=1e-5, rtol=1e-5)

    # 2) Twin-critic fusion, larger batch: state/action streamed once for both Qs;
    #    B=1024 > 256 so the batch is split into 2 tiles of 512 (v7x megacore path).
    big_b = 1024
    kbs, kba = jax.random.split(jax.random.PRNGKey(1))
    big_state = jax.random.normal(kbs, (big_b, num_inputs), jnp.float32)
    big_action = jax.random.normal(kba, (big_b, num_actions), jnp.float32)
    q_big = soft_q_forward(big_state, big_action, [params_q1, params_q2])
    jax.block_until_ready(q_big)
    ref_big = _reference(big_state, big_action, [params_q1, params_q2])
    assert q_big.shape == (big_b, 2)
    assert jnp.allclose(q_big, ref_big, atol=1e-5, rtol=1e-5)

    # 3) bf16 input/weight streaming (f32 accumulation) for the fused twin critic.
    q_bf16 = soft_q_forward(big_state, big_action, [params_q1, params_q2],
                            compute_dtype=jnp.bfloat16)
    jax.block_until_ready(q_bf16)
    ref_bf16 = _reference(big_state, big_action, [params_q1, params_q2],
                          compute_dtype=jnp.bfloat16)
    assert q_bf16.shape == (big_b, 2)
    assert jnp.allclose(q_bf16, ref_bf16, atol=2e-3, rtol=2e-3)

    print("KERNEL_OK")
</pallas_src>

<mosaic_0001>
module attributes {stable_mosaic.version = 11 : i64} {
  func.func @soft_q_kernel(%arg0: i32, %arg1: memref<8x24xf32, #tpu.memory_space<vmem>>, %arg2: memref<8x8xf32, #tpu.memory_space<vmem>>, %arg3: memref<1x24x32xf32, #tpu.memory_space<vmem>>, %arg4: memref<1x8x32xf32, #tpu.memory_space<vmem>>, %arg5: memref<1x32x32xf32, #tpu.memory_space<vmem>>, %arg6: memref<1x3x32xf32, #tpu.memory_space<vmem>>, %arg7: memref<1xf32, #tpu.memory_space<smem>>, %arg8: memref<8x1xf32, #tpu.memory_space<vmem>>) attributes {dimension_semantics = [#tpu.dimension_semantics<parallel>], iteration_bounds = array<i64: 1>, scalar_prefetch = 0 : i64, scratch_operands = 0 : i64, tpu.core_type = #tpu.core_type<tc>, window_params = [{transform_indices = @transform_0, window_bounds = array<i64: 8, 24>}, {transform_indices = @transform_1, window_bounds = array<i64: 8, 8>}, {pipeline_mode = #tpu.pipeline_mode<synchronous>, transform_indices = @transform_2, window_bounds = array<i64: 1, 24, 32>}, {pipeline_mode = #tpu.pipeline_mode<synchronous>, transform_indices = @transform_3, window_bounds = array<i64: 1, 8, 32>}, {pipeline_mode = #tpu.pipeline_mode<synchronous>, transform_indices = @transform_4, window_bounds = array<i64: 1, 32, 32>}, {pipeline_mode = #tpu.pipeline_mode<synchronous>, transform_indices = @transform_5, window_bounds = array<i64: 1, 3, 32>}, {transform_indices = @transform_6, window_bounds = array<i64: 1>}, {transform_indices = @transform_7, window_bounds = array<i64: 8, 1>}]} {
    %c0 = arith.constant 0 : index
    %c0_0 = arith.constant 0 : index
    %0 = vector.load %arg1[%c0, %c0_0] : memref<8x24xf32, #tpu.memory_space<vmem>>, vector<8x24xf32>
    %c0_1 = arith.constant 0 : index
    %c0_2 = arith.constant 0 : index
    %1 = vector.load %arg2[%c0_1, %c0_2] : memref<8x8xf32, #tpu.memory_space<vmem>>, vector<8x8xf32>
    %c0_3 = arith.constant 0 : index
    %c0_4 = arith.constant 0 : index
    %c0_5 = arith.constant 0 : index
    %2 = vector.load %arg6[%c0_3, %c0_4, %c0_5] : memref<1x3x32xf32, #tpu.memory_space<vmem>>, vector<1x3x32xf32>
    %3 = vector.shape_cast %2 : vector<1x3x32xf32> to vector<3x32xf32>
    %4 = vector.extract_strided_slice %3 {offsets = [0, 0], sizes = [1, 32], strides = [1, 1]} : vector<3x32xf32> to vector<1x32xf32>
    %5 = vector.extract_strided_slice %3 {offsets = [1, 0], sizes = [1, 32], strides = [1, 1]} : vector<3x32xf32> to vector<1x32xf32>
    %6 = vector.extract_strided_slice %3 {offsets = [2, 0], sizes = [1, 32], strides = [1, 1]} : vector<3x32xf32> to vector<1x32xf32>
    %c0_6 = arith.constant 0 : index
    %c0_7 = arith.constant 0 : index
    %c0_8 = arith.constant 0 : index
    %7 = vector.load %arg3[%c0_6, %c0_7, %c0_8] : memref<1x24x32xf32, #tpu.memory_space<vmem>>, vector<1x24x32xf32>
    %8 = vector.shape_cast %7 : vector<1x24x32xf32> to vector<24x32xf32>
    %cst = arith.constant dense<0.000000e+00> : vector<8x32xf32>
    %9 = tpu.matmul %0, %8, %cst {dimension_numbers = #tpu.dot_dimension_numbers<[1], [0], [0], [1], [0, 0, 1, 1], [], []>} : vector<8x24xf32>, vector<24x32xf32>, vector<8x32xf32> -> vector<8x32xf32>
    %c0_9 = arith.constant 0 : index
    %c0_10 = arith.constant 0 : index
    %c0_11 = arith.constant 0 : index
    %10 = vector.load %arg4[%c0_9, %c0_10, %c0_11] : memref<1x8x32xf32, #tpu.memory_space<vmem>>, vector<1x8x32xf32>
    %11 = vector.shape_cast %10 : vector<1x8x32xf32> to vector<8x32xf32>
    %cst_12 = arith.constant dense<0.000000e+00> : vector<8x32xf32>
    %12 = tpu.matmul %1, %11, %cst_12 {dimension_numbers = #tpu.dot_dimension_numbers<[1], [0], [0], [1], [0, 0, 1, 1], [], []>} : vector<8x8xf32>, vector<8x32xf32>, vector<8x32xf32> -> vector<8x32xf32>
    %13 = arith.addf %9, %12 : vector<8x32xf32>
    %14 = vector.broadcast %4 : vector<1x32xf32> to vector<8x32xf32>
    %15 = arith.addf %13, %14 : vector<8x32xf32>
    %cst_13 = arith.constant 0.000000e+00 : f32
    %16 = vector.broadcast %cst_13 : f32 to vector<8x32xf32>
    %17 = arith.maximumf %15, %16 : vector<8x32xf32>
    %c0_14 = arith.constant 0 : index
    %c0_15 = arith.constant 0 : index
    %c0_16 = arith.constant 0 : index
    %18 = vector.load %arg5[%c0_14, %c0_15, %c0_16] : memref<1x32x32xf32, #tpu.memory_space<vmem>>, vector<1x32x32xf32>
    %19 = vector.shape_cast %18 : vector<1x32x32xf32> to vector<32x32xf32>
    %cst_17 = arith.constant dense<0.000000e+00> : vector<8x32xf32>
    %20 = tpu.matmul %17, %19, %cst_17 {dimension_numbers = #tpu.dot_dimension_numbers<[1], [0], [0], [1], [0, 0, 1, 1], [], []>} : vector<8x32xf32>, vector<32x32xf32>, vector<8x32xf32> -> vector<8x32xf32>
    %21 = vector.broadcast %5 : vector<1x32xf32> to vector<8x32xf32>
    %22 = arith.addf %20, %21 : vector<8x32xf32>
    %cst_18 = arith.constant 0.000000e+00 : f32
    %23 = vector.broadcast %cst_18 : f32 to vector<8x32xf32>
    %24 = arith.maximumf %22, %23 : vector<8x32xf32>
    %25 = vector.broadcast %6 : vector<1x32xf32> to vector<8x32xf32>
    %26 = arith.mulf %24, %25 : vector<8x32xf32>
    %cst_19 = arith.constant dense<0.000000e+00> : vector<8xf32>
    %27 = vector.multi_reduction <add>, %26, %cst_19 [1] : vector<8x32xf32> to vector<8xf32>
    %28 = vector.shape_cast %27 : vector<8xf32> to vector<8x1xf32>
    %c0_20 = arith.constant 0 : index
    %29 = memref.load %arg7[%c0_20] : memref<1xf32, #tpu.memory_space<smem>>
    %30 = vector.broadcast %29 : f32 to vector<8x1xf32>
    %31 = arith.addf %28, %30 : vector<8x1xf32>
    %c0_21 = arith.constant 0 : index
    %c0_22 = arith.constant 0 : index
    %32 = vector.load %arg8[%c0_21, %c0_22] : memref<8x1xf32, #tpu.memory_space<vmem>>, vector<8x1xf32>
    tpu.vector_store %arg8[%c0_21, %c0_22], %31 {strides = array<i32>} : memref<8x1xf32, #tpu.memory_space<vmem>>, vector<8x1xf32>,
    return
  }
  func.func @transform_0(%arg0: i32) -> (i32, i32) {
    %c0_i32 = arith.constant 0 : i32
    %c0_i32_0 = arith.constant 0 : i32
    return %arg0, %c0_i32 : i32, i32
  }
  func.func @transform_1(%arg0: i32) -> (i32, i32) {
    %c0_i32 = arith.constant 0 : i32
    %c0_i32_0 = arith.constant 0 : i32
    return %arg0, %c0_i32 : i32, i32
  }
  func.func @transform_2(%arg0: i32) -> (i32, i32, i32) {
    %c0_i32 = arith.constant 0 : i32
    %c0_i32_0 = arith.constant 0 : i32
    %c0_i32_1 = arith.constant 0 : i32
    %c0_i32_2 = arith.constant 0 : i32
    return %c0_i32, %c0_i32_0, %c0_i32_1 : i32, i32, i32
  }
  func.func @transform_3(%arg0: i32) -> (i32, i32, i32) {
    %c0_i32 = arith.constant 0 : i32
    %c0_i32_0 = arith.constant 0 : i32
    %c0_i32_1 = arith.constant 0 : i32
    %c0_i32_2 = arith.constant 0 : i32
    return %c0_i32, %c0_i32_0, %c0_i32_1 : i32, i32, i32
  }
  func.func @transform_4(%arg0: i32) -> (i32, i32, i32) {
    %c0_i32 = arith.constant 0 : i32
    %c0_i32_0 = arith.constant 0 : i32
    %c0_i32_1 = arith.constant 0 : i32
    %c0_i32_2 = arith.constant 0 : i32
    return %c0_i32, %c0_i32_0, %c0_i32_1 : i32, i32, i32
  }
  func.func @transform_5(%arg0: i32) -> (i32, i32, i32) {
    %c0_i32 = arith.constant 0 : i32
    %c0_i32_0 = arith.constant 0 : i32
    %c0_i32_1 = arith.constant 0 : i32
    %c0_i32_2 = arith.constant 0 : i32
    return %c0_i32, %c0_i32_0, %c0_i32_1 : i32, i32, i32
  }
  func.func @transform_6(%arg0: i32) -> i32 {
    %c0_i32 = arith.constant 0 : i32
    %c0_i32_0 = arith.constant 0 : i32
    return %c0_i32 : i32
  }
  func.func @transform_7(%arg0: i32) -> (i32, i32) {
    %c0_i32 = arith.constant 0 : i32
    %c0_i32_0 = arith.constant 0 : i32
    return %arg0, %c0_i32 : i32, i32
  }
}

</mosaic_0001>

<llo_original>
// kernel: tpu_custom_call.1
$region0: #{tpu_custom_call.1}
  #allocation0 [shape = 'u32[]', space=smem, size = 0x4, offset = 0x4, fixed_abs, tag = 'smem constant byte address 0x4 - core index']
  #allocation1 [shape = 'u32[144,128]{1,0:T(1,128)}', space=vmem, size = 0x12000, scoped, tag = 'internal scratch']
  #allocation2 [shape = 'f32[1]{0:T(128)S(6)}', space=smem, size = 0x200, scoped, tag = 'scoped memory for tpu_custom_call.1']
  %s0 = inlined_call_operand.vmem [shape: f32[8,24], index: 0, kind: input, shape index: {}]
  %s1 = inlined_call_operand.hbm [shape: f32[8,8], index: 1, kind: input, shape index: {}]
  %s2 = inlined_call_operand.hbm [shape: f32[1,24,32], index: 2, kind: input, shape index: {}]
  %s3 = inlined_call_operand.hbm [shape: f32[1,8,32], index: 3, kind: input, shape index: {}]
  %s4 = inlined_call_operand.hbm [shape: f32[1,32,32], index: 4, kind: input, shape index: {}]
  %s5 = inlined_call_operand.vmem [shape: f32[1,3,32], index: 5, kind: input, shape index: {}]
  %s6 = inlined_call_operand.<no memory space> [shape: f32[1], index: 6, kind: input, shape index: {}]
  %s7 = inlined_call_operand.vmem [shape: f32[8,1], index: 7, kind: output, shape index: {}]
  %s8 = sld [smem:[#allocation0]]
  $region54: #{tpu_custom_call.1} parent=0
    _
  %s10 = ssub.s32 1, %s8
  %s11 = scalar_select 0, %s10, %s8
  %12 = sst [smem:[#allocation2]] %s6
  $region1: #{tpu_custom_call.1} parent=0
    #allocation3 [shape = 'u8[4096]{0}', space=vmem, size = 0x1000, scoped, tag = 'input window, operand 1, single buffered']
    #allocation4 [shape = 's32[1]{0}', space=sflag, size = 0x4, scoped, tag = 'scoped memory for tpu_custom_call.1']
    #allocation5 [shape = 'u8[12288]{0}', space=vmem, size = 0x3000, scoped, tag = 'input window, operand 2, single buffered']
    #allocation6 [shape = 's32[1]{0}', space=sflag, size = 0x4, scoped, tag = 'scoped memory for tpu_custom_call.1']
    #allocation7 [shape = 'u8[4096]{0}', space=vmem, size = 0x1000, scoped, tag = 'input window, operand 3, single buffered']
    #allocation8 [shape = 'u8[16384]{0}', space=vmem, size = 0x4000, scoped, tag = 'input window, operand 4, single buffered']
    #allocation9 [shape = 's32[1]{0}', space=sflag, size = 0x4, scoped, tag = 'scoped memory for tpu_custom_call.1']
    %13 = vsyncpa [#allocation4], 0
    %14 = vsyncpa [#allocation6], 0
    %15 = vsyncpa [#allocation9], 0
    // Predicated region
    $region2: #{tpu_custom_call.1} parent=1 // pred_check
      _
    $region3: #{tpu_custom_call.1} parent=1 // pred_check_branch
      %17 = sbr.rel (0) target = $region5
    $region4: #{tpu_custom_call.1} parent=1 // pred_region
      _
    $region5: #{tpu_custom_call.1} parent=1 // pred_fallthru
      _
    // Predicated region
    $region6: #{tpu_custom_call.1} parent=1 // pred_check
      _
    $region7: #{tpu_custom_call.1} parent=1 // pred_check_branch
      %19 = sbr.rel (0) target = $region9
    $region8: #{tpu_custom_call.1} parent=1 // pred_region
      %s21 = ssub.s32 128, 128
      %22 = vsyncadd [#allocation4], %s21
      %s24 = sshll.u32 [#allocation3], 4
      %s25 = int_to_ptr.vmem [resolvable:$true] %s24
      %27 = dma.hbm_to_vmem [thread:$0]  %s1, 128, %s25, [#allocation4]
    $region9: #{tpu_custom_call.1} parent=1 // pred_fallthru
      _
    // Predicated region
    $region10: #{tpu_custom_call.1} parent=1 // pred_check
      _
    $region11: #{tpu_custom_call.1} parent=1 // pred_check_branch
      %29 = sbr.rel (0) target = $region13
    $region12: #{tpu_custom_call.1} parent=1 // pred_region
      %s31 = ssub.s32 384, 384
      %32 = vsyncadd [#allocation6], %s31
      %s33 = sshll.u32 [#allocation5], 4
      %s34 = int_to_ptr.vmem [resolvable:$true] %s33
      %39 = dma.hbm_to_vmem [thread:$0]  %s2, 384, %s34, [#allocation6], 128, 128, 8
    $region13: #{tpu_custom_call.1} parent=1 // pred_fallthru
      _
    // Predicated region
    $region14: #{tpu_custom_call.1} parent=1 // pred_check
      _
    $region15: #{tpu_custom_call.1} parent=1 // pred_check_branch
      %41 = sbr.rel (0) target = $region17
    $region16: #{tpu_custom_call.1} parent=1 // pred_region
      %s43 = ssub.s32 128, 128
      %44 = vsyncadd [#allocation6], %s43
      %s46 = sshll.u32 [#allocation7], 4
      %s47 = int_to_ptr.vmem [resolvable:$true] %s46
      %49 = dma.hbm_to_vmem [thread:$0]  %s3, 128, %s47, [#allocation6]
    $region17: #{tpu_custom_call.1} parent=1 // pred_fallthru
      _
    // Predicated region
    $region18: #{tpu_custom_call.1} parent=1 // pred_check
      _
    $region19: #{tpu_custom_call.1} parent=1 // pred_check_branch
      %51 = sbr.rel (0) target = $region21
    $region20: #{tpu_custom_call.1} parent=1 // pred_region
      %s53 = ssub.s32 512, 512
      %54 = vsyncadd [#allocation9], %s53
      %s55 = sshll.u32 [#allocation8], 4
      %s56 = int_to_ptr.vmem [resolvable:$true] %s55
      %61 = dma.hbm_to_vmem [thread:$0]  %s4, 512, %s56, [#allocation9], 128, 128, 8
    $region21: #{tpu_custom_call.1} parent=1 // pred_fallthru
      _
    // Predicated region
    $region22: #{tpu_custom_call.1} parent=1 // pred_check
      _
    $region23: #{tpu_custom_call.1} parent=1 // pred_check_branch
      %63 = sbr.rel (0) target = $region25
    $region24: #{tpu_custom_call.1} parent=1 // pred_region
      _
    $region25: #{tpu_custom_call.1} parent=1 // pred_fallthru
      _
    // Predicated region
    $region26: #{tpu_custom_call.1} parent=1 // pred_check
      _
    $region27: #{tpu_custom_call.1} parent=1 // pred_check_branch
      %65 = sbr.rel (0) target = $region29
    $region28: #{tpu_custom_call.1} parent=1 // pred_region
      _
    $region29: #{tpu_custom_call.1} parent=1 // pred_fallthru
      _
    // Predicated region
    $region30: #{tpu_custom_call.1} parent=1 // pred_check
      _
    $region31: #{tpu_custom_call.1} parent=1 // pred_check_branch
      %67 = sbr.rel (0) target = $region33
    $region32: #{tpu_custom_call.1} parent=1 // pred_region
      %68 = dma.done [#allocation4], 128
    $region33: #{tpu_custom_call.1} parent=1 // pred_fallthru
      _
    // Predicated region
    $region34: #{tpu_custom_call.1} parent=1 // pred_check
      _
    $region35: #{tpu_custom_call.1} parent=1 // pred_check_branch
      %70 = sbr.rel (0) target = $region37
    $region36: #{tpu_custom_call.1} parent=1 // pred_region
      %71 = dma.done [#allocation6], 384
    $region37: #{tpu_custom_call.1} parent=1 // pred_fallthru
      _
    // Predicated region
    $region38: #{tpu_custom_call.1} parent=1 // pred_check
      _
    $region39: #{tpu_custom_call.1} parent=1 // pred_check_branch
      %73 = sbr.rel (0) target = $region41
    $region40: #{tpu_custom_call.1} parent=1 // pred_region
      %74 = dma.done [#allocation6], 128
    $region41: #{tpu_custom_call.1} parent=1 // pred_fallthru
      _
    // Predicated region
    $region42: #{tpu_custom_call.1} parent=1 // pred_check
      _
    $region43: #{tpu_custom_call.1} parent=1 // pred_check_branch
      %76 = sbr.rel (0) target = $region45
    $region44: #{tpu_custom_call.1} parent=1 // pred_region
      %77 = dma.done [#allocation9], 512
    $region45: #{tpu_custom_call.1} parent=1 // pred_fallthru
      _
    %v78 = vld [vmem:[%s0] sm:$0xff]
    %v79 = vld [vmem:[#allocation3] sm:$0xff]
    %v80 = vld [vmem:[%s5] sm:$0x7]
    %v81 = vld [vmem:[#allocation5] sm:$0xff]
    %v82 = vld [vmem:[#allocation5 + $0x8] sm:$0xff]
    %v83 = vld [vmem:[#allocation5 + $0x10] sm:$0xff]
    %v84 = vld [vmem:[#allocation7] sm:$0xff]
    %vm85 = vcmask 64512
    %v87 = vsel %vm85, %v79, 0
    %89 = vmatprep.subr.mxu0 0.0
    %90 = vmatpush1.msra.mxu0 0.0
    %91 = vmatprep.subr.mxu0 0.0
    %92 = vmatpush1.msra.mxu0 0.0
    %93 = vmatprep.subr.mxu0 0.0
    %94 = vmatpush1.msra.mxu0 0.0
    %95 = vmatprep.subr.mxu0 0.0
    %96 = vmatpush1.msra.mxu0 0.0
    %97 = vmatprep.subr.mxu0 0.0
    %98 = vmatpush1.msra.mxu0 0.0
    %99 = vmatprep.subr.mxu0 0.0
    %100 = vmatpush1.msra.mxu0 0.0
    %101 = vmatprep.subr.mxu0 0.0
    %102 = vmatpush1.msra.mxu0 0.0
    %103 = vmatprep.subr.mxu0 0.0
    %104 = vmatpush1.msra.mxu0 0.0
    %105 = vmatprep.subr.mxu0 0.0
    %106 = vmatpush1.msra.mxu0 0.0
    %107 = vmatprep.subr.mxu0 0.0
    %108 = vmatpush1.msra.mxu0 0.0
    %109 = vmatprep.subr.mxu0 0.0
    %110 = vmatpush1.msra.mxu0 0.0
    %111 = vmatprep.subr.mxu0 0.0
    %112 = vmatpush1.msra.mxu0 0.0
    %113 = vmatprep.subr.mxu0 0.0
    %114 = vmatpush1.msra.mxu0 0.0
    %115 = vmatprep.subr.mxu0 0.0
    %116 = vmatpush1.msra.mxu0 0.0
    %117 = vmatprep.subr.mxu0 0.0
    %118 = vmatpush1.msra.mxu0 0.0
    %119 = vmatprep.subr.mxu0 0.0
    %120 = vmatpush1.msra.mxu0 %v84
    %121 = vmatprep.subr.mxu0 0.0
    %122 = vmatpush2.msra.mxu0 0.0
    %123 = vmatprep.subr.mxu0 0.0
    %124 = vmatpush2.msra.mxu0 0.0
    %125 = vmatprep.subr.mxu0 0.0
    %126 = vmatpush2.msra.mxu0 0.0
    %127 = vmatprep.subr.mxu0 0.0
    %128 = vmatpush2.msra.mxu0 0.0
    %129 = vmatprep.subr.mxu0 0.0
    %130 = vmatpush2.msra.mxu0 0.0
    %131 = vmatprep.subr.mxu0 0.0
    %132 = vmatpush2.msra.mxu0 0.0
    %133 = vmatprep.subr.mxu0 0.0
    %134 = vmatpush2.msra.mxu0 0.0
    %135 = vmatprep.subr.mxu0 0.0
    %136 = vmatpush2.msra.mxu0 0.0
    %137 = vmatprep.subr.mxu0 0.0
    %138 = vmatpush2.msra.mxu0 0.0
    %139 = vmatprep.subr.mxu0 0.0
    %140 = vmatpush2.msra.mxu0 0.0
    %141 = vmatprep.subr.mxu0 0.0
    %142 = vmatpush2.msra.mxu0 0.0
    %143 = vmatprep.subr.mxu0 0.0
    %144 = vmatpush2.msra.mxu0 0.0
    %145 = vmatprep.subr.mxu0 0.0
    %146 = vmatpush2.msra.mxu0 0.0
    %147 = vmatprep.subr.mxu0 0.0
    %148 = vmatpush2.msra.mxu0 0.0
    %149 = vmatprep.subr.mxu0 0.0
    %150 = vmatpush2.msra.mxu0 0.0
    %151 = vmatprep.subr.mxu0 0.0
    %152 = vmatpush2.msra.mxu0 0.0
    %153 = vmatprep.mubr.f32.mxu0 0.0
    %154 = vmatmul.mubr.f32.gmra.mxu0 %v87
    %v155 = vpop.f32.mrf.mxu0
    %v156 = vadd.f32 0.0, %v155
    %v157 = vpop.f32.mrf.mxu0
    %158 = vdwg.mxu0
    %vm159 = vcmask 195584
    %v161 = vsel %vm159, %v78, 0
    %163 = vmatprep.subr.mxu0 0.0
    %164 = vmatpush1.msra.mxu0 0.0
    %165 = vmatprep.subr.mxu0 0.0
    %166 = vmatpush1.msra.mxu0 0.0
    %167 = vmatprep.subr.mxu0 0.0
    %168 = vmatpush1.msra.mxu0 0.0
    %169 = vmatprep.subr.mxu0 0.0
    %170 = vmatpush1.msra.mxu0 0.0
    %171 = vmatprep.subr.mxu0 0.0
    %172 = vmatpush1.msra.mxu0 0.0
    %173 = vmatprep.subr.mxu0 0.0
    %174 = vmatpush1.msra.mxu0 0.0
    %175 = vmatprep.subr.mxu0 0.0
    %176 = vmatpush1.msra.mxu0 0.0
    %177 = vmatprep.subr.mxu0 0.0
    %178 = vmatpush1.msra.mxu0 0.0
    %179 = vmatprep.subr.mxu0 0.0
    %180 = vmatpush1.msra.mxu0 0.0
    %181 = vmatprep.subr.mxu0 0.0
    %182 = vmatpush1.msra.mxu0 0.0
    %183 = vmatprep.subr.mxu0 0.0
    %184 = vmatpush1.msra.mxu0 0.0
    %185 = vmatprep.subr.mxu0 0.0
    %186 = vmatpush1.msra.mxu0 0.0
    %187 = vmatprep.subr.mxu0 0.0
    %188 = vmatpush1.msra.mxu0 0.0
    %189 = vmatprep.subr.mxu0 0.0
    %190 = vmatpush1.msra.mxu0 %v83
    %191 = vmatprep.subr.mxu0 0.0
    %192 = vmatpush1.msra.mxu0 %v82
    %193 = vmatprep.subr.mxu0 0.0
    %194 = vmatpush1.msra.mxu0 %v81
    %195 = vmatprep.subr.mxu0 0.0
    %196 = vmatpush2.msra.mxu0 0.0
    %197 = vmatprep.subr.mxu0 0.0
    %198 = vmatpush2.msra.mxu0 0.0
    %199 = vmatprep.subr.mxu0 0.0
    %200 = vmatpush2.msra.mxu0 0.0
    %201 = vmatprep.subr.mxu0 0.0
    %202 = vmatpush2.msra.mxu0 0.0
    %203 = vmatprep.subr.mxu0 0.0
    %204 = vmatpush2.msra.mxu0 0.0
    %205 = vmatprep.subr.mxu0 0.0
    %206 = vmatpush2.msra.mxu0 0.0
    %207 = vmatprep.subr.mxu0 0.0
    %208 = vmatpush2.msra.mxu0 0.0
    %209 = vmatprep.subr.mxu0 0.0
    %210 = vmatpush2.msra.mxu0 0.0
    %211 = vmatprep.subr.mxu0 0.0
    %212 = vmatpush2.msra.mxu0 0.0
    %213 = vmatprep.subr.mxu0 0.0
    %214 = vmatpush2.msra.mxu0 0.0
    %215 = vmatprep.subr.mxu0 0.0
    %216 = vmatpush2.msra.mxu0 0.0
    %217 = vmatprep.subr.mxu0 0.0
    %218 = vmatpush2.msra.mxu0 0.0
    %219 = vmatprep.subr.mxu0 0.0
    %220 = vmatpush2.msra.mxu0 0.0
    %221 = vmatprep.subr.mxu0 0.0
    %222 = vmatpush2.msra.mxu0 0.0
    %223 = vmatprep.subr.mxu0 0.0
    %224 = vmatpush2.msra.mxu0 0.0
    %225 = vmatprep.subr.mxu0 0.0
    %226 = vmatpush2.msra.mxu0 0.0
    %227 = vmatprep.mubr.f32.mxu0 0.0
    %228 = vmatmul.mubr.f32.gmra.mxu0 %v161
    %v229 = vpop.f32.mrf.mxu0
    %v230 = vadd.f32 %v156, %v229
    %v231 = vpop.f32.mrf.mxu0
    %232 = vdwg.mxu0
    %v233 = vlaneseq
    %v234 = vshrl.u32 %v233, 7
    %v235 = vsub.s32 0, %v234
    %v236 = vrot.slane %v80, %v235
    %v237 = vadd.f32 %v230, %v236
    %v238 = vmax.f32 %v237, 0.0
    %v239 = vld [vmem:[#allocation8] sm:$0xff]
    %v240 = vld [vmem:[#allocation8 + $0x8] sm:$0xff]
    %v241 = vld [vmem:[#allocation8 + $0x10] sm:$0xff]
    %v242 = vld [vmem:[#allocation8 + $0x18] sm:$0xff]
    %v243 = vlaneseq
    %v244 = vshrl.u32 %v243, 7
    %v245 = vsub.s32 1, %v244
    %v246 = vrot.slane %v80, %v245
    %vm247 = vcmask 261120
    %v249 = vsel %vm247, %v238, 0
    %251 = vmatprep.subr.mxu0 0.0
    %252 = vmatpush1.msra.mxu0 0.0
    %253 = vmatprep.subr.mxu0 0.0
    %254 = vmatpush1.msra.mxu0 0.0
    %255 = vmatprep.subr.mxu0 0.0
    %256 = vmatpush1.msra.mxu0 0.0
    %257 = vmatprep.subr.mxu0 0.0
    %258 = vmatpush1.msra.mxu0 0.0
    %259 = vmatprep.subr.mxu0 0.0
    %260 = vmatpush1.msra.mxu0 0.0
    %261 = vmatprep.subr.mxu0 0.0
    %262 = vmatpush1.msra.mxu0 0.0
    %263 = vmatprep.subr.mxu0 0.0
    %264 = vmatpush1.msra.mxu0 0.0
    %265 = vmatprep.subr.mxu0 0.0
    %266 = vmatpush1.msra.mxu0 0.0
    %267 = vmatprep.subr.mxu0 0.0
    %268 = vmatpush1.msra.mxu0 0.0
    %269 = vmatprep.subr.mxu0 0.0
    %270 = vmatpush1.msra.mxu0 0.0
    %271 = vmatprep.subr.mxu0 0.0
    %272 = vmatpush1.msra.mxu0 0.0
    %273 = vmatprep.subr.mxu0 0.0
    %274 = vmatpush1.msra.mxu0 0.0
    %275 = vmatprep.subr.mxu0 0.0
    %276 = vmatpush1.msra.mxu0 %v242
    %277 = vmatprep.subr.mxu0 0.0
    %278 = vmatpush1.msra.mxu0 %v241
    %279 = vmatprep.subr.mxu0 0.0
    %280 = vmatpush1.msra.mxu0 %v240
    %281 = vmatprep.subr.mxu0 0.0
    %282 = vmatpush1.msra.mxu0 %v239
    %283 = vmatprep.subr.mxu0 0.0
    %284 = vmatpush2.msra.mxu0 0.0
    %285 = vmatprep.subr.mxu0 0.0
    %286 = vmatpush2.msra.mxu0 0.0
    %287 = vmatprep.subr.mxu0 0.0
    %288 = vmatpush2.msra.mxu0 0.0
    %289 = vmatprep.subr.mxu0 0.0
    %290 = vmatpush2.msra.mxu0 0.0
    %291 = vmatprep.subr.mxu0 0.0
    %292 = vmatpush2.msra.mxu0 0.0
    %293 = vmatprep.subr.mxu0 0.0
    %294 = vmatpush2.msra.mxu0 0.0
    %295 = vmatprep.subr.mxu0 0.0
    %296 = vmatpush2.msra.mxu0 0.0
    %297 = vmatprep.subr.mxu0 0.0
    %298 = vmatpush2.msra.mxu0 0.0
    %299 = vmatprep.subr.mxu0 0.0
    %300 = vmatpush2.msra.mxu0 0.0
    %301 = vmatprep.subr.mxu0 0.0
    %302 = vmatpush2.msra.mxu0 0.0
    %303 = vmatprep.subr.mxu0 0.0
    %304 = vmatpush2.msra.mxu0 0.0
    %305 = vmatprep.subr.mxu0 0.0
    %306 = vmatpush2.msra.mxu0 0.0
    %307 = vmatprep.subr.mxu0 0.0
    %308 = vmatpush2.msra.mxu0 0.0
    %309 = vmatprep.subr.mxu0 0.0
    %310 = vmatpush2.msra.mxu0 0.0
    %311 = vmatprep.subr.mxu0 0.0
    %312 = vmatpush2.msra.mxu0 0.0
    %313 = vmatprep.subr.mxu0 0.0
    %314 = vmatpush2.msra.mxu0 0.0
    %315 = vmatprep.mubr.f32.mxu0 0.0
    %316 = vmatmul.mubr.f32.gmra.mxu0 %v249
    %v317 = vpop.f32.mrf.mxu0
    %v318 = vadd.f32 %v246, %v317
    %v319 = vpop.f32.mrf.mxu0
    %320 = vdwg.mxu0
    %v321 = vmax.f32 %v318, 0.0
    %v322 = vlaneseq
    %v323 = vshrl.u32 %v322, 7
    %v324 = vsub.s32 2, %v323
    %v325 = vrot.slane %v80, %v324
    %v326 = vmul.f32 %v321, %v325
    %v327 = vsel %vm247, %v326, 0.0
    %328 = vadd.xlane.f32.xlu0 %v327
    %v329 = vpop.xlane.xlu0 %328
    %s330 = sld [smem:[#allocation2]]
    %v331 = vstv %s330
    %v332 = vadd.f32 %v329, %v331
    %vm333 = vcmask 7168
    %334 = vst.msk [vmem:[%s7] sm:$0xff] %vm333, %v332
    // Predicated region
    $region46: #{tpu_custom_call.1} parent=1 // pred_check
      _
    $region47: #{tpu_custom_call.1} parent=1 // pred_check_branch
      %336 = sbr.rel (0) target = $region49
    $region48: #{tpu_custom_call.1} parent=1 // pred_region
      _
    $region49: #{tpu_custom_call.1} parent=1 // pred_fallthru
      _
    // Predicated region
    $region50: #{tpu_custom_call.1} parent=1 // pred_check
      _
    $region51: #{tpu_custom_call.1} parent=1 // pred_check_branch
      %338 = sbr.rel (0) target = $region53
    $region52: #{tpu_custom_call.1} parent=1 // pred_region
      _
    $region53: #{tpu_custom_call.1} parent=1 // pred_fallthru
      _
    %339 = vsyncpa [#allocation4], 1
    %340 = vsyncpa [#allocation6], 1
    %341 = vsyncpa [#allocation9], 1

</llo_original>
